<compile_context>
chip_gen: v5e
topology: v5e:2x2
jax: 0.10.0
libtpu: 0.0.40
codegen_flags: <defaults>
</compile_context>

<pallas_src>
import functools

import jax
import jax.numpy as jnp
from jax import lax
from jax.experimental import pallas as pl
from jax.experimental.pallas import tpu as pltpu


# ----------------------------------------------------------------------------
# Fused attention-head kernel.
# Grid = (B, num_kv_tiles). For each batch element:
#   step 0      : project Q for the whole sequence, init online-softmax state.
#   every step  : project K,V (fused) for one KV tile, update (m, l, acc).
#   last step   : normalize and store the (S, hs) output once (single store).
# ----------------------------------------------------------------------------
def _attention_head_kernel(x_q_ref, x_kv_ref, wq_ref, bq_ref, wkv_ref, bkv_ref,
                           o_ref,
                           q_scr, m_scr, l_scr, acc_scr,
                           *, head_size, matmul_dtype):
    j = pl.program_id(1)
    n_kv = pl.num_programs(1)
    scale = 1.0 / (float(head_size) ** 0.5)

    @pl.when(j == 0)
    def _init():
        xq = x_q_ref[0].astype(matmul_dtype)                         # (S, D)
        q = jnp.dot(xq, wq_ref[...].astype(matmul_dtype),
                    preferred_element_type=jnp.float32)
        q_scr[...] = (q + bq_ref[...]) * scale                       # fold 1/sqrt(hs)
        m_scr[...] = jnp.full(m_scr.shape, -jnp.inf, jnp.float32)
        l_scr[...] = jnp.zeros(l_scr.shape, jnp.float32)
        acc_scr[...] = jnp.zeros(acc_scr.shape, jnp.float32)

    # Fused K/V projection for this KV tile: one MXU pass with N = 2*head_size.
    xkv = x_kv_ref[0].astype(matmul_dtype)                           # (Tkv, D)
    kv = jnp.dot(xkv, wkv_ref[...].astype(matmul_dtype),
                 preferred_element_type=jnp.float32) + bkv_ref[...]  # (Tkv, 2*hs)
    k = kv[:, :head_size]                                            # (Tkv, hs)
    v = kv[:, head_size:]                                            # (Tkv, hs)

    # scores = (Q/sqrt(hs)) @ K^T, contracting dim 1 vs 1 (no K transpose).
    s = lax.dot_general(q_scr[...], k,
                        dimension_numbers=(((1,), (1,)), ((), ())),
                        preferred_element_type=jnp.float32)          # (S, Tkv)

    # Online (flash) softmax update.
    m_prev = m_scr[...]
    m_new = jnp.maximum(m_prev, jnp.max(s, axis=-1, keepdims=True))
    alpha = jnp.exp(m_prev - m_new)
    p = jnp.exp(s - m_new)
    l_scr[...] = alpha * l_scr[...] + jnp.sum(p, axis=-1, keepdims=True)
    acc_scr[...] = alpha * acc_scr[...] + jnp.dot(
        p.astype(matmul_dtype), v.astype(matmul_dtype),
        preferred_element_type=jnp.float32)
    m_scr[...] = m_new

    @pl.when(j == n_kv - 1)
    def _finalize():
        inv_l = pl.reciprocal(l_scr[...], approx=True)               # EUP slot
        o_ref[0] = (acc_scr[...] * inv_l).astype(o_ref.dtype)


def _pick_kv_tile(seq_len):
    for t in (512, 256, 128):
        if seq_len % t == 0:
            return t
    return seq_len


def attention_head(x, wq, bq, wk, bk, wv, bv, *, matmul_dtype=jnp.float32):
    """Pallas implementation of AttentionHead.forward.

    x : (B, S, D) float32
    wq/wk/wv : (D, hs)   (already transposed: kernel computes x @ W)
    bq/bk/bv : (1, hs)
    Returns (B, S, hs).
    """
    B, S, D = x.shape
    hs = wq.shape[1]

    tkv = _pick_kv_tile(S)
    num_kv = S // tkv

    # Fuse K and V weights so each KV tile needs exactly one projection matmul.
    wkv = jnp.concatenate([wk, wv], axis=1)      # (D, 2*hs)
    bkv = jnp.concatenate([bk, bv], axis=1)      # (1, 2*hs)

    kernel = functools.partial(_attention_head_kernel,
                               head_size=hs, matmul_dtype=matmul_dtype)

    # Rough VMEM budget: double-buffered input blocks + output + scratch +
    # in-flight temporaries, with 50% headroom (raised at least to 32 MiB).
    itemsize = jnp.dtype(x.dtype).itemsize
    block_bytes = (2 * S * D * itemsize                      # x for Q
                   + 2 * tkv * D * itemsize                  # x KV tile
                   + 2 * (D * hs + hs + 2 * D * hs + 2 * hs) * itemsize
                   + 2 * S * hs * itemsize)                  # output block
    scratch_bytes = (2 * S * hs + 2 * S) * 4                 # q, acc, m, l (f32)
    temp_bytes = 2 * S * tkv * 4                             # scores + probs
    vmem_limit = int(1.5 * (block_bytes + scratch_bytes + temp_bytes))
    vmem_limit = max(vmem_limit, 32 * 1024 * 1024)

    return pl.pallas_call(
        kernel,
        out_shape=jax.ShapeDtypeStruct((B, S, hs), x.dtype),
        grid_spec=pltpu.PrefetchScalarGridSpec(
            num_scalar_prefetch=0,
            grid=(B, num_kv),
            in_specs=[
                pl.BlockSpec((1, S, D), lambda b, j: (b, 0, 0)),     # x (queries)
                pl.BlockSpec((1, tkv, D), lambda b, j: (b, j, 0)),   # x (KV tile)
                pl.BlockSpec((D, hs), lambda b, j: (0, 0)),          # Wq
                pl.BlockSpec((1, hs), lambda b, j: (0, 0)),          # bq
                pl.BlockSpec((D, 2 * hs), lambda b, j: (0, 0)),      # W_kv fused
                pl.BlockSpec((1, 2 * hs), lambda b, j: (0, 0)),      # b_kv fused
            ],
            out_specs=pl.BlockSpec((1, S, hs), lambda b, j: (b, 0, 0)),
            scratch_shapes=[
                pltpu.VMEM((S, hs), jnp.float32),   # Q (resident per batch)
                pltpu.VMEM((S, 1), jnp.float32),    # running max m
                pltpu.VMEM((S, 1), jnp.float32),    # running denom l
                pltpu.VMEM((S, hs), jnp.float32),   # output accumulator
            ],
        ),
        compiler_params=pltpu.CompilerParams(
            dimension_semantics=("parallel", "arbitrary"),
            vmem_limit_bytes=vmem_limit,
        ),
    )(x, x, wq, bq, wkv, bkv)


def reference_attention_head(x, wq, bq, wk, bk, wv, bv):
    """Pure-JAX mirror of the PyTorch AttentionHead.forward (sanity check)."""
    hs = wq.shape[1]
    q = x @ wq + bq[0]
    k = x @ wk + bk[0]
    v = x @ wv + bv[0]
    att = (q @ jnp.swapaxes(k, -2, -1)) / (hs ** 0.5)
    att = jax.nn.softmax(att, axis=-1)
    return att @ v


if __name__ == "__main__":
    B, S, d_model, head_size = 2, 8, 32, 16

    key = jax.random.PRNGKey(0)
    kx, k0, k1, k2, k3, k4, k5 = jax.random.split(key, 7)
    x = jax.random.normal(kx, (B, S, d_model), jnp.float32)
    w_scale = 0.05
    wq = w_scale * jax.random.normal(k0, (d_model, head_size), jnp.float32)
    bq = w_scale * jax.random.normal(k1, (1, head_size), jnp.float32)
    wk = w_scale * jax.random.normal(k2, (d_model, head_size), jnp.float32)
    bk = w_scale * jax.random.normal(k3, (1, head_size), jnp.float32)
    wv = w_scale * jax.random.normal(k4, (d_model, head_size), jnp.float32)
    bv = w_scale * jax.random.normal(k5, (1, head_size), jnp.float32)

    out = attention_head(x, wq, bq, wk, bk, wv, bv)
    out = jax.block_until_ready(out)

    ref = reference_attention_head(x, wq, bq, wk, bk, wv, bv)
    assert out.shape == (B, S, head_size)
    assert jnp.allclose(out, ref, atol=2e-3, rtol=2e-3), "mismatch vs reference"

    print("KERNEL_OK")
</pallas_src>

<mosaic_0001>
module attributes {stable_mosaic.version = 11 : i64} {
  func.func @_attention_head_kernel(%arg0: i32, %arg1: i32, %arg2: memref<1x8x32xf32, #tpu.memory_space<vmem>>, %arg3: memref<1x8x32xf32, #tpu.memory_space<vmem>>, %arg4: memref<32x16xf32, #tpu.memory_space<vmem>>, %arg5: memref<1x16xf32, #tpu.memory_space<vmem>>, %arg6: memref<32x32xf32, #tpu.memory_space<vmem>>, %arg7: memref<1x32xf32, #tpu.memory_space<vmem>>, %arg8: memref<1x8x16xf32, #tpu.memory_space<vmem>>, %arg9: memref<8x16xf32, #tpu.memory_space<vmem>>, %arg10: memref<8x1xf32, #tpu.memory_space<vmem>>, %arg11: memref<8x1xf32, #tpu.memory_space<vmem>>, %arg12: memref<8x16xf32, #tpu.memory_space<vmem>>) attributes {dimension_semantics = [#tpu.dimension_semantics<parallel>, #tpu.dimension_semantics<arbitrary>], iteration_bounds = array<i64: 2, 1>, scalar_prefetch = 0 : i64, scratch_operands = 4 : i64, tpu.core_type = #tpu.core_type<tc>, window_params = [{transform_indices = @transform_0, window_bounds = array<i64: 1, 8, 32>}, {transform_indices = @transform_1, window_bounds = array<i64: 1, 8, 32>}, {pipeline_mode = #tpu.pipeline_mode<synchronous>, transform_indices = @transform_2, window_bounds = array<i64: 32, 16>}, {pipeline_mode = #tpu.pipeline_mode<synchronous>, transform_indices = @transform_3, window_bounds = array<i64: 1, 16>}, {pipeline_mode = #tpu.pipeline_mode<synchronous>, transform_indices = @transform_4, window_bounds = array<i64: 32, 32>}, {pipeline_mode = #tpu.pipeline_mode<synchronous>, transform_indices = @transform_5, window_bounds = array<i64: 1, 32>}, {transform_indices = @transform_6, window_bounds = array<i64: 1, 8, 16>}]} {
    %c0_i32 = arith.constant 0 : i32
    %0 = arith.cmpi eq, %arg1, %c0_i32 : i32
    %1 = arith.extui %0 : i1 to i32
    %c0_i32_0 = arith.constant 0 : i32
    %2 = arith.cmpi ne, %1, %c0_i32_0 : i32
    scf.if %2 {
      %c0_27 = arith.constant 0 : index
      %c0_28 = arith.constant 0 : index
      %c0_29 = arith.constant 0 : index
      %39 = vector.load %arg2[%c0_27, %c0_28, %c0_29] : memref<1x8x32xf32, #tpu.memory_space<vmem>>, vector<1x8x32xf32>
      %40 = vector.shape_cast %39 : vector<1x8x32xf32> to vector<8x32xf32>
      %c0_30 = arith.constant 0 : index
      %c0_31 = arith.constant 0 : index
      %41 = vector.load %arg4[%c0_30, %c0_31] : memref<32x16xf32, #tpu.memory_space<vmem>>, vector<32x16xf32>
      %cst_32 = arith.constant dense<0.000000e+00> : vector<8x16xf32>
      %42 = tpu.matmul %40, %41, %cst_32 {dimension_numbers = #tpu.dot_dimension_numbers<[1], [0], [0], [1], [0, 0, 1, 1], [], []>} : vector<8x32xf32>, vector<32x16xf32>, vector<8x16xf32> -> vector<8x16xf32>
      %c0_33 = arith.constant 0 : index
      %c0_34 = arith.constant 0 : index
      %43 = vector.load %arg5[%c0_33, %c0_34] : memref<1x16xf32, #tpu.memory_space<vmem>>, vector<1x16xf32>
      %44 = vector.broadcast %43 : vector<1x16xf32> to vector<8x16xf32>
      %45 = arith.addf %42, %44 : vector<8x16xf32>
      %cst_35 = arith.constant 2.500000e-01 : f32
      %46 = vector.broadcast %cst_35 : f32 to vector<8x16xf32>
      %47 = arith.mulf %45, %46 : vector<8x16xf32>
      %c0_36 = arith.constant 0 : index
      %c0_37 = arith.constant 0 : index
      %48 = vector.load %arg9[%c0_36, %c0_37] : memref<8x16xf32, #tpu.memory_space<vmem>>, vector<8x16xf32>
      tpu.vector_store %arg9[%c0_36, %c0_37], %47 {strides = array<i32>} : memref<8x16xf32, #tpu.memory_space<vmem>>, vector<8x16xf32>,
      %cst_38 = arith.constant 0xFF800000 : f32
      %49 = vector.broadcast %cst_38 : f32 to vector<8x1xf32>
      %c0_39 = arith.constant 0 : index
      %c0_40 = arith.constant 0 : index
      %50 = vector.load %arg10[%c0_39, %c0_40] : memref<8x1xf32, #tpu.memory_space<vmem>>, vector<8x1xf32>
      tpu.vector_store %arg10[%c0_39, %c0_40], %49 {strides = array<i32>} : memref<8x1xf32, #tpu.memory_space<vmem>>, vector<8x1xf32>,
      %cst_41 = arith.constant 0.000000e+00 : f32
      %51 = vector.broadcast %cst_41 : f32 to vector<8x1xf32>
      %c0_42 = arith.constant 0 : index
      %c0_43 = arith.constant 0 : index
      %52 = vector.load %arg11[%c0_42, %c0_43] : memref<8x1xf32, #tpu.memory_space<vmem>>, vector<8x1xf32>
      tpu.vector_store %arg11[%c0_42, %c0_43], %51 {strides = array<i32>} : memref<8x1xf32, #tpu.memory_space<vmem>>, vector<8x1xf32>,
      %cst_44 = arith.constant 0.000000e+00 : f32
      %53 = vector.broadcast %cst_44 : f32 to vector<8x16xf32>
      %c0_45 = arith.constant 0 : index
      %c0_46 = arith.constant 0 : index
      %54 = vector.load %arg12[%c0_45, %c0_46] : memref<8x16xf32, #tpu.memory_space<vmem>>, vector<8x16xf32>
      tpu.vector_store %arg12[%c0_45, %c0_46], %53 {strides = array<i32>} : memref<8x16xf32, #tpu.memory_space<vmem>>, vector<8x16xf32>,
    } else {
    }
    %c0 = arith.constant 0 : index
    %c0_1 = arith.constant 0 : index
    %c0_2 = arith.constant 0 : index
    %3 = vector.load %arg3[%c0, %c0_1, %c0_2] : memref<1x8x32xf32, #tpu.memory_space<vmem>>, vector<1x8x32xf32>
    %4 = vector.shape_cast %3 : vector<1x8x32xf32> to vector<8x32xf32>
    %c0_3 = arith.constant 0 : index
    %c0_4 = arith.constant 0 : index
    %5 = vector.load %arg6[%c0_3, %c0_4] : memref<32x32xf32, #tpu.memory_space<vmem>>, vector<32x32xf32>
    %cst = arith.constant dense<0.000000e+00> : vector<8x32xf32>
    %6 = tpu.matmul %4, %5, %cst {dimension_numbers = #tpu.dot_dimension_numbers<[1], [0], [0], [1], [0, 0, 1, 1], [], []>} : vector<8x32xf32>, vector<32x32xf32>, vector<8x32xf32> -> vector<8x32xf32>
    %c0_5 = arith.constant 0 : index
    %c0_6 = arith.constant 0 : index
    %7 = vector.load %arg7[%c0_5, %c0_6] : memref<1x32xf32, #tpu.memory_space<vmem>>, vector<1x32xf32>
    %8 = vector.broadcast %7 : vector<1x32xf32> to vector<8x32xf32>
    %9 = arith.addf %6, %8 : vector<8x32xf32>
    %10 = vector.extract_strided_slice %9 {offsets = [0, 0], sizes = [8, 16], strides = [1, 1]} : vector<8x32xf32> to vector<8x16xf32>
    %11 = vector.extract_strided_slice %9 {offsets = [0, 16], sizes = [8, 16], strides = [1, 1]} : vector<8x32xf32> to vector<8x16xf32>
    %c0_7 = arith.constant 0 : index
    %c0_8 = arith.constant 0 : index
    %12 = vector.load %arg9[%c0_7, %c0_8] : memref<8x16xf32, #tpu.memory_space<vmem>>, vector<8x16xf32>
    %cst_9 = arith.constant dense<0.000000e+00> : vector<8x8xf32>
    %13 = tpu.matmul %12, %10, %cst_9 {dimension_numbers = #tpu.dot_dimension_numbers<[1], [1], [0], [0], [0, 0, 1, 0], [], []>} : vector<8x16xf32>, vector<8x16xf32>, vector<8x8xf32> -> vector<8x8xf32>
    %c0_10 = arith.constant 0 : index
    %c0_11 = arith.constant 0 : index
    %14 = vector.load %arg10[%c0_10, %c0_11] : memref<8x1xf32, #tpu.memory_space<vmem>>, vector<8x1xf32>
    %cst_12 = arith.constant dense<0xFF800000> : vector<8xf32>
    %15 = vector.multi_reduction <maximumf>, %13, %cst_12 [1] : vector<8x8xf32> to vector<8xf32>
    %16 = vector.shape_cast %15 : vector<8xf32> to vector<8x1xf32>
    %17 = arith.maximumf %14, %16 : vector<8x1xf32>
    %18 = arith.subf %14, %17 : vector<8x1xf32>
    %19 = math.exp %18 : vector<8x1xf32>
    %20 = vector.broadcast %17 : vector<8x1xf32> to vector<8x8xf32>
    %21 = arith.subf %13, %20 : vector<8x8xf32>
    %22 = math.exp %21 : vector<8x8xf32>
    %c0_13 = arith.constant 0 : index
    %c0_14 = arith.constant 0 : index
    %23 = vector.load %arg11[%c0_13, %c0_14] : memref<8x1xf32, #tpu.memory_space<vmem>>, vector<8x1xf32>
    %24 = arith.mulf %19, %23 : vector<8x1xf32>
    %cst_15 = arith.constant dense<0.000000e+00> : vector<8xf32>
    %25 = vector.multi_reduction <add>, %22, %cst_15 [1] : vector<8x8xf32> to vector<8xf32>
    %26 = vector.shape_cast %25 : vector<8xf32> to vector<8x1xf32>
    %27 = arith.addf %24, %26 : vector<8x1xf32>
    %c0_16 = arith.constant 0 : index
    %c0_17 = arith.constant 0 : index
    %28 = vector.load %arg11[%c0_16, %c0_17] : memref<8x1xf32, #tpu.memory_space<vmem>>, vector<8x1xf32>
    tpu.vector_store %arg11[%c0_16, %c0_17], %27 {strides = array<i32>} : memref<8x1xf32, #tpu.memory_space<vmem>>, vector<8x1xf32>,
    %c0_18 = arith.constant 0 : index
    %c0_19 = arith.constant 0 : index
    %29 = vector.load %arg12[%c0_18, %c0_19] : memref<8x16xf32, #tpu.memory_space<vmem>>, vector<8x16xf32>
    %30 = vector.broadcast %19 : vector<8x1xf32> to vector<8x16xf32>
    %31 = arith.mulf %30, %29 : vector<8x16xf32>
    %cst_20 = arith.constant dense<0.000000e+00> : vector<8x16xf32>
    %32 = tpu.matmul %22, %11, %cst_20 {dimension_numbers = #tpu.dot_dimension_numbers<[1], [0], [0], [1], [0, 0, 1, 1], [], []>} : vector<8x8xf32>, vector<8x16xf32>, vector<8x16xf32> -> vector<8x16xf32>
    %33 = arith.addf %31, %32 : vector<8x16xf32>
    %c0_21 = arith.constant 0 : index
    %c0_22 = arith.constant 0 : index
    %34 = vector.load %arg12[%c0_21, %c0_22] : memref<8x16xf32, #tpu.memory_space<vmem>>, vector<8x16xf32>
    tpu.vector_store %arg12[%c0_21, %c0_22], %33 {strides = array<i32>} : memref<8x16xf32, #tpu.memory_space<vmem>>, vector<8x16xf32>,
    %c0_23 = arith.constant 0 : index
    %c0_24 = arith.constant 0 : index
    %35 = vector.load %arg10[%c0_23, %c0_24] : memref<8x1xf32, #tpu.memory_space<vmem>>, vector<8x1xf32>
    tpu.vector_store %arg10[%c0_23, %c0_24], %17 {strides = array<i32>} : memref<8x1xf32, #tpu.memory_space<vmem>>, vector<8x1xf32>,
    %c0_i32_25 = arith.constant 0 : i32
    %36 = arith.cmpi eq, %arg1, %c0_i32_25 : i32
    %37 = arith.extui %36 : i1 to i32
    %c0_i32_26 = arith.constant 0 : i32
    %38 = arith.cmpi ne, %37, %c0_i32_26 : i32
    scf.if %38 {
      %c0_27 = arith.constant 0 : index
      %c0_28 = arith.constant 0 : index
      %39 = vector.load %arg11[%c0_27, %c0_28] : memref<8x1xf32, #tpu.memory_space<vmem>>, vector<8x1xf32>
      %40 = tpu.reciprocal %39 {approx = true} : vector<8x1xf32> -> vector<8x1xf32>
      %c0_29 = arith.constant 0 : index
      %c0_30 = arith.constant 0 : index
      %41 = vector.load %arg12[%c0_29, %c0_30] : memref<8x16xf32, #tpu.memory_space<vmem>>, vector<8x16xf32>
      %42 = vector.broadcast %40 : vector<8x1xf32> to vector<8x16xf32>
      %43 = arith.mulf %41, %42 : vector<8x16xf32>
      %c0_31 = arith.constant 0 : index
      %c0_32 = arith.constant 0 : index
      %c0_33 = arith.constant 0 : index
      %44 = vector.load %arg8[%c0_31, %c0_32, %c0_33] : memref<1x8x16xf32, #tpu.memory_space<vmem>>, vector<1x8x16xf32>
      %45 = vector.shape_cast %44 : vector<1x8x16xf32> to vector<8x16xf32>
      %46 = vector.shape_cast %43 : vector<8x16xf32> to vector<1x8x16xf32>
      tpu.vector_store %arg8[%c0_31, %c0_32, %c0_33], %46 {strides = array<i32>} : memref<1x8x16xf32, #tpu.memory_space<vmem>>, vector<1x8x16xf32>,
    } else {
    }
    return
  }
  func.func @transform_0(%arg0: i32, %arg1: i32) -> (i32, i32, i32) {
    %c0_i32 = arith.constant 0 : i32
    %c0_i32_0 = arith.constant 0 : i32
    %c0_i32_1 = arith.constant 0 : i32
    return %arg0, %c0_i32, %c0_i32_0 : i32, i32, i32
  }
  func.func @transform_1(%arg0: i32, %arg1: i32) -> (i32, i32, i32) {
    %c0_i32 = arith.constant 0 : i32
    %c0_i32_0 = arith.constant 0 : i32
    return %arg0, %arg1, %c0_i32 : i32, i32, i32
  }
  func.func @transform_2(%arg0: i32, %arg1: i32) -> (i32, i32) {
    %c0_i32 = arith.constant 0 : i32
    %c0_i32_0 = arith.constant 0 : i32
    %c0_i32_1 = arith.constant 0 : i32
    return %c0_i32, %c0_i32_0 : i32, i32
  }
  func.func @transform_3(%arg0: i32, %arg1: i32) -> (i32, i32) {
    %c0_i32 = arith.constant 0 : i32
    %c0_i32_0 = arith.constant 0 : i32
    %c0_i32_1 = arith.constant 0 : i32
    return %c0_i32, %c0_i32_0 : i32, i32
  }
  func.func @transform_4(%arg0: i32, %arg1: i32) -> (i32, i32) {
    %c0_i32 = arith.constant 0 : i32
    %c0_i32_0 = arith.constant 0 : i32
    %c0_i32_1 = arith.constant 0 : i32
    return %c0_i32, %c0_i32_0 : i32, i32
  }
  func.func @transform_5(%arg0: i32, %arg1: i32) -> (i32, i32) {
    %c0_i32 = arith.constant 0 : i32
    %c0_i32_0 = arith.constant 0 : i32
    %c0_i32_1 = arith.constant 0 : i32
    return %c0_i32, %c0_i32_0 : i32, i32
  }
  func.func @transform_6(%arg0: i32, %arg1: i32) -> (i32, i32, i32) {
    %c0_i32 = arith.constant 0 : i32
    %c0_i32_0 = arith.constant 0 : i32
    %c0_i32_1 = arith.constant 0 : i32
    return %arg0, %c0_i32, %c0_i32_0 : i32, i32, i32
  }
}

</mosaic_0001>

<llo_original>
// kernel: tpu_custom_call.1
$region0: #{tpu_custom_call.1}
  #allocation0 [shape = 'u32[]', space=smem, size = 0x4, offset = 0x4, fixed_abs, tag = 'smem constant byte address 0x4 - core index']
  #allocation1 [shape = 'u32[72,128]{1,0:T(1,128)}', space=vmem, size = 0x9000, scoped, tag = 'internal scratch']
  #allocation2 [shape = 'f32[8,16]{1,0:T(8,128)}', space=vmem, size = 0x1000, scoped, tag = 'scratch operand']
  #allocation3 [shape = 'f32[8,1]{1,0:T(8,128)}', space=vmem, size = 0x1000, scoped, tag = 'scratch operand']
  #allocation4 [shape = 'f32[8,1]{1,0:T(8,128)}', space=vmem, size = 0x1000, scoped, tag = 'scratch operand']
  #allocation5 [shape = 'f32[8,16]{1,0:T(8,128)}', space=vmem, size = 0x1000, scoped, tag = 'scratch operand']
  %s0 = inlined_call_operand.vmem [shape: f32[2,8,32], index: 0, kind: input, shape index: {}]
  %s1 = inlined_call_operand.hbm [shape: f32[2,8,32], index: 1, kind: input, shape index: {}]
  %s2 = inlined_call_operand.vmem [shape: f32[32,16], index: 2, kind: input, shape index: {}]
  %s3 = inlined_call_operand.vmem [shape: f32[1,16], index: 3, kind: input, shape index: {}]
  %s4 = inlined_call_operand.vmem [shape: f32[32,32], index: 4, kind: input, shape index: {}]
  %s5 = inlined_call_operand.vmem [shape: f32[1,32], index: 5, kind: input, shape index: {}]
  %s6 = inlined_call_operand.hbm [shape: f32[2,8,16], index: 6, kind: output, shape index: {}]
  %s7 = sld [smem:[#allocation0]]
  $region69: #{tpu_custom_call.1} parent=0
    _
  %s9 = ssub.s32 1, %s7
  %s10 = scalar_select 0, %s9, %s7
  $region1: #{tpu_custom_call.1} parent=0
    #allocation6 [shape = 'u8[8192]{0}', space=vmem, size = 0x2000, scoped, tag = 'input window, operand 1']
    #allocation7 [shape = 's32[2]{0}', space=sflag, size = 0x8, scoped, tag = 'scoped memory for tpu_custom_call.1']
    #allocation8 [shape = 's32[2]{0}', space=sflag, size = 0x8, scoped, tag = 'scoped memory for tpu_custom_call.1']
    #allocation9 [shape = 'u8[8192]{0}', space=vmem, size = 0x2000, scoped, tag = 'output window, operand 0']
    %11 = vsyncpa [#allocation7], 0
    %s12 = scalar_lea.sflag [#allocation7], 1
    %13 = vsyncpa %s12, 0
    %14 = vsyncpa [#allocation8], 0
    %s15 = scalar_lea.sflag [#allocation8], 1
    %16 = vsyncpa %s15, 0
    loop: start=0, step=1, limit=4
    $region2: #{tpu_custom_call.1} parent=1 // loop_pre_header
      _
    $region3: #{tpu_custom_call.1} parent=1 // loop_header
      %s18 = sphi 0, %s22
      %p19 = scmp.ge.s32.totalorder %s18, 4
      %s25 = sphi 0, %s37
      %s26 = sphi 0, %s33
      %s27 = sphi 0, %s25
      %s28 = sphi 0, %s26
      %s29 = sphi 0, %s27
      %s30 = sphi 0, %s28
      %s40 = sphi 0, %s42
      %s43 = sphi 0, %s40
      %s44 = sphi 0, %s43
      %s60 = sphi 0, %s44
      %s68 = sphi 0, %s70
      %s71 = sphi 0, %s68
      %s72 = sphi 0, %s71
      %s88 = sphi 0, %s72
      %s92 = sphi 0, %s92
      %s94 = sphi 0, %s92
      %s95 = sphi 0, %s94
      %s109 = sphi 0, %s95
      %s113 = sphi 0, %s113
      %s115 = sphi 0, %s113
      %s116 = sphi 0, %s115
      %s130 = sphi 0, %s116
      %s134 = sphi 0, %s134
      %s136 = sphi 0, %s134
      %s137 = sphi 0, %s136
      %s151 = sphi 0, %s137
      %s155 = sphi 0, %s155
      %s157 = sphi 0, %s155
      %s158 = sphi 0, %s157
      %s172 = sphi 0, %s158
      %s178 = sphi 0, %s180
      %s181 = sphi 0, %s178
      %s182 = sphi 0, %s181
      %s198 = sphi 0, %s182
    $region4: #{tpu_custom_call.1} parent=1 // loop_header_branch
      %21 = sbr.rel (%p19) target = $region8
    $region5: #{tpu_custom_call.1} parent=1 // loop_body
      %s23 = ssub.s32 %s18, 1
      %s24 = ssub.s32 %s18, 2
      %s31 = sadd.s32 1, %s26
      %p32 = scmp.ge.s32.totalorder %s31, 1
      %s33 = scalar_select %p32, 0, %s31
      %s34 = sadd.s32 1, %s25
      %s35 = scalar_select %p32, %s34, %s25
      %p36 = scmp.ge.s32.totalorder %s35, 2
      %s37 = scalar_select %p36, 0, %s35
      %s38 = ssub.s32 %s25, %s37
      %p39 = scmp.eq.s32.totalorder %s38, 0
      %s41 = sadd.s32 %s40, 1
      %s42 = scalar_select %p39, %s40, %s41
      %p45 = pneg %p39
      %p46 = scmp.eq.s32.totalorder %s18, 1
      %p47 = por %p45, %p46
      %p48 = scmp.ne.s32.totalorder %s40, %s43
      %p49 = scmp.eq.s32.totalorder %s18, 0
      %p50 = por %p48, %p49
      %p51 = scmp.ne.s32.totalorder %s40, %s43
      %p52 = scmp.eq.s32.totalorder %s23, 1
      %p53 = por %p51, %p52
      %p54 = scmp.ne.s32.totalorder %s43, %s44
      %p55 = scmp.eq.s32.totalorder %s23, 0
      %p56 = por %p54, %p55
      %p57 = scmp.ne.s32.totalorder %s43, %s44
      %p58 = scmp.eq.s32.totalorder %s24, 1
      %p59 = por %p57, %p58
      %p61 = scmp.ne.s32.totalorder %s44, %s60
      %p62 = scmp.eq.s32.totalorder %s24, 0
      %p63 = por %p61, %p62
      %s64 = ssub.s32 %s25, %s37
      %s65 = ssub.s32 %s26, %s33
      %s66 = sor.u32 %s64, %s65
      %p67 = scmp.eq.s32.totalorder %s66, 0
      %s69 = sadd.s32 %s68, 1
      %s70 = scalar_select %p67, %s68, %s69
      %p73 = pneg %p67
      %p74 = scmp.eq.s32.totalorder %s18, 1
      %p75 = por %p73, %p74
      %p76 = scmp.ne.s32.totalorder %s68, %s71
      %p77 = scmp.eq.s32.totalorder %s18, 0
      %p78 = por %p76, %p77
      %p79 = scmp.ne.s32.totalorder %s68, %s71
      %p80 = scmp.eq.s32.totalorder %s23, 1
      %p81 = por %p79, %p80
      %p82 = scmp.ne.s32.totalorder %s71, %s72
      %p83 = scmp.eq.s32.totalorder %s23, 0
      %p84 = por %p82, %p83
      %p85 = scmp.ne.s32.totalorder %s71, %s72
      %p86 = scmp.eq.s32.totalorder %s24, 1
      %p87 = por %p85, %p86
      %p89 = scmp.ne.s32.totalorder %s72, %s88
      %p90 = scmp.eq.s32.totalorder %s24, 0
      %p91 = por %p89, %p90
      %s93 = sadd.s32 %s92, 1
      %p96 = scmp.eq.s32.totalorder %s18, 1
      %p97 = scmp.ne.s32.totalorder %s92, %s94
      %p98 = scmp.eq.s32.totalorder %s18, 0
      %p99 = por %p97, %p98
      %p100 = scmp.ne.s32.totalorder %s92, %s94
      %p101 = scmp.eq.s32.totalorder %s23, 1
      %p102 = por %p100, %p101
      %p103 = scmp.ne.s32.totalorder %s94, %s95
      %p104 = scmp.eq.s32.totalorder %s23, 0
      %p105 = por %p103, %p104
      %p106 = scmp.ne.s32.totalorder %s94, %s95
      %p107 = scmp.eq.s32.totalorder %s24, 1
      %p108 = por %p106, %p107
      %p110 = scmp.ne.s32.totalorder %s95, %s109
      %p111 = scmp.eq.s32.totalorder %s24, 0
      %p112 = por %p110, %p111
      %s114 = sadd.s32 %s113, 1
      %p117 = scmp.eq.s32.totalorder %s18, 1
      %p118 = scmp.ne.s32.totalorder %s113, %s115
      %p119 = scmp.eq.s32.totalorder %s18, 0
      %p120 = por %p118, %p119
      %p121 = scmp.ne.s32.totalorder %s113, %s115
      %p122 = scmp.eq.s32.totalorder %s23, 1
      %p123 = por %p121, %p122
      %p124 = scmp.ne.s32.totalorder %s115, %s116
      %p125 = scmp.eq.s32.totalorder %s23, 0
      %p126 = por %p124, %p125
      %p127 = scmp.ne.s32.totalorder %s115, %s116
      %p128 = scmp.eq.s32.totalorder %s24, 1
      %p129 = por %p127, %p128
      %p131 = scmp.ne.s32.totalorder %s116, %s130
      %p132 = scmp.eq.s32.totalorder %s24, 0
      %p133 = por %p131, %p132
      %s135 = sadd.s32 %s134, 1
      %p138 = scmp.eq.s32.totalorder %s18, 1
      %p139 = scmp.ne.s32.totalorder %s134, %s136
      %p140 = scmp.eq.s32.totalorder %s18, 0
      %p141 = por %p139, %p140
      %p142 = scmp.ne.s32.totalorder %s134, %s136
      %p143 = scmp.eq.s32.totalorder %s23, 1
      %p144 = por %p142, %p143
      %p145 = scmp.ne.s32.totalorder %s136, %s137
      %p146 = scmp.eq.s32.totalorder %s23, 0
      %p147 = por %p145, %p146
      %p148 = scmp.ne.s32.totalorder %s136, %s137
      %p149 = scmp.eq.s32.totalorder %s24, 1
      %p150 = por %p148, %p149
      %p152 = scmp.ne.s32.totalorder %s137, %s151
      %p153 = scmp.eq.s32.totalorder %s24, 0
      %p154 = por %p152, %p153
      %s156 = sadd.s32 %s155, 1
      %p159 = scmp.eq.s32.totalorder %s18, 1
      %p160 = scmp.ne.s32.totalorder %s155, %s157
      %p161 = scmp.eq.s32.totalorder %s18, 0
      %p162 = por %p160, %p161
      %p163 = scmp.ne.s32.totalorder %s155, %s157
      %p164 = scmp.eq.s32.totalorder %s23, 1
      %p165 = por %p163, %p164
      %p166 = scmp.ne.s32.totalorder %s157, %s158
      %p167 = scmp.eq.s32.totalorder %s23, 0
      %p168 = por %p166, %p167
      %p169 = scmp.ne.s32.totalorder %s157, %s158
      %p170 = scmp.eq.s32.totalorder %s24, 1
      %p171 = por %p169, %p170
      %p173 = scmp.ne.s32.totalorder %s158, %s172
      %p174 = scmp.eq.s32.totalorder %s24, 0
      %p175 = por %p173, %p174
      %s176 = ssub.s32 %s25, %s37
      %p177 = scmp.eq.s32.totalorder %s176, 0
      %s179 = sadd.s32 %s178, 1
      %s180 = scalar_select %p177, %s178, %s179
      %p183 = pneg %p177
      %p184 = scmp.eq.s32.totalorder %s18, 1
      %p185 = por %p183, %p184
      %p186 = scmp.ne.s32.totalorder %s178, %s181
      %p187 = scmp.eq.s32.totalorder %s18, 0
      %p188 = por %p186, %p187
      %p189 = scmp.ne.s32.totalorder %s178, %s181
      %p190 = scmp.eq.s32.totalorder %s23, 1
      %p191 = por %p189, %p190
      %p192 = scmp.ne.s32.totalorder %s181, %s182
      %p193 = scmp.eq.s32.totalorder %s23, 0
      %p194 = por %p192, %p193
      %p195 = scmp.ne.s32.totalorder %s181, %s182
      %p196 = scmp.eq.s32.totalorder %s24, 1
      %p197 = por %p195, %p196
      %p199 = scmp.ne.s32.totalorder %s182, %s198
      %p200 = scmp.eq.s32.totalorder %s24, 0
      %p201 = por %p199, %p200
      %p202 = scmp.le.s32.totalorder 1, %s18
      %p203 = scmp.lt.s32.totalorder %s18, 3
      %p204 = pnand %p202, %p203
      %p205 = pneg %p204
      // Predicated region
      $region9: #{tpu_custom_call.1} parent=5 // pred_check
        _
      $region10: #{tpu_custom_call.1} parent=5 // pred_check_branch
        %207 = sbr.rel (%p204) target = $region12
      $region11: #{tpu_custom_call.1} parent=5 // pred_region
        %s208 = ssub.s32 %s18, 1
        // Predicated region
        $region13: #{tpu_custom_call.1} parent=11 // pred_check
          %p209 = pneg %p105
        $region14: #{tpu_custom_call.1} parent=11 // pred_check_branch
          %211 = sbr.rel (%p209) target = $region16
        $region15: #{tpu_custom_call.1} parent=11 // pred_region
          _
        $region16: #{tpu_custom_call.1} parent=11 // pred_fallthru
          _
        // Predicated region
        $region17: #{tpu_custom_call.1} parent=11 // pred_check
          %p212 = pneg %p126
        $region18: #{tpu_custom_call.1} parent=11 // pred_check_branch
          %214 = sbr.rel (%p212) target = $region20
        $region19: #{tpu_custom_call.1} parent=11 // pred_region
          _
        $region20: #{tpu_custom_call.1} parent=11 // pred_fallthru
          _
        // Predicated region
        $region21: #{tpu_custom_call.1} parent=11 // pred_check
          %p215 = pneg %p147
        $region22: #{tpu_custom_call.1} parent=11 // pred_check_branch
          %217 = sbr.rel (%p215) target = $region24
        $region23: #{tpu_custom_call.1} parent=11 // pred_region
          _
        $region24: #{tpu_custom_call.1} parent=11 // pred_fallthru
          _
        // Predicated region
        $region25: #{tpu_custom_call.1} parent=11 // pred_check
          %p218 = pneg %p168
        $region26: #{tpu_custom_call.1} parent=11 // pred_check_branch
          %220 = sbr.rel (%p218) target = $region28
        $region27: #{tpu_custom_call.1} parent=11 // pred_region
          _
        $region28: #{tpu_custom_call.1} parent=11 // pred_fallthru
          _
      $region12: #{tpu_custom_call.1} parent=5 // pred_fallthru
        _
      %p221 = scmp.lt.s32.totalorder %s18, 2
      // Predicated region
      $region29: #{tpu_custom_call.1} parent=5 // pred_check
        %p222 = pneg %p221
      $region30: #{tpu_custom_call.1} parent=5 // pred_check_branch
        %224 = sbr.rel (%p222) target = $region32
      $region31: #{tpu_custom_call.1} parent=5 // pred_region
        // Predicated region
        $region33: #{tpu_custom_call.1} parent=31 // pred_check
          %p225 = pneg %p50
        $region34: #{tpu_custom_call.1} parent=31 // pred_check_branch
          %227 = sbr.rel (%p225) target = $region36
        $region35: #{tpu_custom_call.1} parent=31 // pred_region
          %p228 = scmp.lt.s32.totalorder %s25, 1
          %s229 = scalar_select %p228, %s25, 1
          %s230 = smul.addr %s229, 8
          %s231 = scalar_lea.vmem %s0, %s230
        $region36: #{tpu_custom_call.1} parent=31 // pred_fallthru
          _
        // Predicated region
        $region37: #{tpu_custom_call.1} parent=31 // pred_check
          %p232 = pneg %p78
        $region38: #{tpu_custom_call.1} parent=31 // pred_check_branch
          %234 = sbr.rel (%p232) target = $region40
        $region39: #{tpu_custom_call.1} parent=31 // pred_region
          %s235 = sand.u32 %s68, 1
          %s236 = scalar_lea.sflag [#allocation7], %s235
          %s237 = sand.u32 %s68, 1
          %s238 = smul.addr %s237, 8
          %s239 = scalar_lea.vmem [#allocation6], %s238
          %241 = vsyncadd %s236, 0
          %s242 = sadd.s32 %s26, %s25
          %s243 = smul.addr %s242, 8
          %s244 = scalar_lea.hbm %s1, %s243
          %s246 = sshll.u32 %s244, 4
          %s247 = int_to_ptr.hbm [resolvable:$true] %s246
          %s248 = sshll.u32 %s239, 4
          %s249 = int_to_ptr.vmem [resolvable:$true] %s248
          %251 = dma.hbm_to_vmem [thread:$0]  %s247, 128, %s249, %s236
        $region40: #{tpu_custom_call.1} parent=31 // pred_fallthru
          _
      $region32: #{tpu_custom_call.1} parent=5 // pred_fallthru
        _
      %p252 = scmp.le.s32.totalorder 1, %s18
      %p253 = scmp.lt.s32.totalorder %s18, 3
      %p254 = pnand %p252, %p253
      %p255 = pneg %p254
      // Predicated region
      $region41: #{tpu_custom_call.1} parent=5 // pred_check
        _
      $region42: #{tpu_custom_call.1} parent=5 // pred_check_branch
        %257 = sbr.rel (%p254) target = $region44
      $region43: #{tpu_custom_call.1} parent=5 // pred_region
        %s258 = ssub.s32 %s18, 1
        %s259 = sand.u32 %s71, 1
        %s260 = scalar_lea.sflag [#allocation7], %s259
        %s261 = sand.u32 %s71, 1
        %s262 = smul.addr %s261, 8
        %s263 = scalar_lea.vmem [#allocation6], %s262
        // Predicated region
        $region45: #{tpu_custom_call.1} parent=43 // pred_check
          %p264 = pneg %p84
        $region46: #{tpu_custom_call.1} parent=43 // pred_check_branch
          %266 = sbr.rel (%p264) target = $region48
        $region47: #{tpu_custom_call.1} parent=43 // pred_region
          %268 = dma.done %s260, 128
        $region48: #{tpu_custom_call.1} parent=43 // pred_fallthru
          _
        %p269 = scmp.lt.s32.totalorder %s27, 1
        %s270 = scalar_select %p269, %s27, 1
        %s271 = smul.addr %s270, 8
        %s272 = scalar_lea.vmem %s0, %s271
        %p273 = pneg %p56
        %p274 = pneg %p53
        %s275 = sand.u32 %s71, 1
        %s276 = scalar_lea.sflag [#allocation7], %s275
        %s277 = sand.u32 %s71, 1
        %s278 = smul.addr %s277, 8
        %s279 = scalar_lea.vmem [#allocation6], %s278
        %p280 = pneg %p84
        %p281 = pneg %p81
        %p282 = pneg %p105
        %p283 = pneg %p102
        %p284 = pneg %p126
        %p285 = pneg %p123
        %p286 = pneg %p147
        %p287 = pneg %p144
        %p288 = pneg %p168
        %p289 = pneg %p165
        %p290 = pneg %p194
        %p291 = pneg %p191
        %s292 = sand.u32 %s181, 1
        %s293 = scalar_lea.sflag [#allocation8], %s292
        %s294 = sand.u32 %s181, 1
        %s295 = smul.addr %s294, 8
        %s296 = scalar_lea.vmem [#allocation9], %s295
        %p297 = scmp.lt.s32.totalorder %s27, 1
        %s298 = scalar_select %p297, %s27, 1
        %s299 = smul.addr %s298, 8
        %s300 = scalar_lea.vmem %s0, %s299
        %p301 = scmp.eq.s32.totalorder %s28, 0
        // Predicated region
        $region49: #{tpu_custom_call.1} parent=43 // pred_check
          %p302 = pneg %p301
        $region50: #{tpu_custom_call.1} parent=43 // pred_check_branch
          %304 = sbr.rel (%p302) target = $region52
        $region51: #{tpu_custom_call.1} parent=43 // pred_region
          %v305 = vld [vmem:[%s300] sm:$0xff]
          %v306 = vld [vmem:[%s2] sm:$0xff]
          %v307 = vld [vmem:[%s2 + $0x8] sm:$0xff]
          %v308 = vld [vmem:[%s2 + $0x10] sm:$0xff]
          %v309 = vld [vmem:[%s2 + $0x18] sm:$0xff]
          %v310 = vld [vmem:[%s3] sm:$0x1]
          %v312 = vperm.slane %v310, 0
          %vm314 = vcmask 261120
          %v316 = vsel %vm314, %v305, 0
          %318 = vmatpush.msra.mxu0 0.0
          %319 = vmatpush.msra.mxu0 0.0
          %320 = vmatpush.msra.mxu0 0.0
          %321 = vmatpush.msra.mxu0 0.0
          %322 = vmatpush.msra.mxu0 0.0
          %323 = vmatpush.msra.mxu0 0.0
          %324 = vmatpush.msra.mxu0 0.0
          %325 = vmatpush.msra.mxu0 0.0
          %326 = vmatpush.msra.mxu0 0.0
          %327 = vmatpush.msra.mxu0 0.0
          %328 = vmatpush.msra.mxu0 0.0
          %329 = vmatpush.msra.mxu0 0.0
          %330 = vmatpush.msra.mxu0 %v309
          %331 = vmatpush.msra.mxu0 %v308
          %332 = vmatpush.msra.mxu0 %v307
          %333 = vmatpush.msra.mxu0 %v306
          %334 = vmatmul.f32.gmra.mxu0 %v316
          %v335 = vpop.f32.mrf.mxu0
          %v336 = vadd.f32 %v312, %v335
          %337 = vdwg.mxu0
          %v338 = vmul.f32 %v336, 0.25
          %vm339 = vcmask 130048
          %340 = vst.msk [vmem:[#allocation2] sm:$0xff] %vm339, %v338
          %vm341 = vcmask 7168
          %342 = vst.msk [vmem:[#allocation3] sm:$0xff] %vm341, -inf
          %343 = vst.msk [vmem:[#allocation4] sm:$0xff] %vm341, 0.0
          %344 = vst.msk [vmem:[#allocation5] sm:$0xff] %vm339, 0.0
        $region52: #{tpu_custom_call.1} parent=43 // pred_fallthru
          _
        %v345 = vld [vmem:[%s263] sm:$0xff]
        %v346 = vld [vmem:[%s4] sm:$0xff]
        %v347 = vld [vmem:[%s4 + $0x8] sm:$0xff]
        %v348 = vld [vmem:[%s4 + $0x10] sm:$0xff]
        %v349 = vld [vmem:[%s4 + $0x18] sm:$0xff]
        %v350 = vld [vmem:[%s5] sm:$0x1]
        %v352 = vperm.slane %v350, 0
        %vm354 = vcmask 261120
        %v356 = vsel %vm354, %v345, 0
        %358 = vmatpush.msra.mxu0 0.0
        %359 = vmatpush.msra.mxu0 0.0
        %360 = vmatpush.msra.mxu0 0.0
        %361 = vmatpush.msra.mxu0 0.0
        %362 = vmatpush.msra.mxu0 0.0
        %363 = vmatpush.msra.mxu0 0.0
        %364 = vmatpush.msra.mxu0 0.0
        %365 = vmatpush.msra.mxu0 0.0
        %366 = vmatpush.msra.mxu0 0.0
        %367 = vmatpush.msra.mxu0 0.0
        %368 = vmatpush.msra.mxu0 0.0
        %369 = vmatpush.msra.mxu0 0.0
        %370 = vmatpush.msra.mxu0 %v349
        %371 = vmatpush.msra.mxu0 %v348
        %372 = vmatpush.msra.mxu0 %v347
        %373 = vmatpush.msra.mxu0 %v346
        %374 = vmatmul.f32.gmra.mxu0 %v356
        %v375 = vpop.f32.mrf.mxu0
        %v376 = vadd.f32 %v352, %v375
        %377 = vdwg.mxu0
        %v378 = vld [vmem:[#allocation2] sm:$0xff]
        %vm379 = vcmask 130048
        %v381 = vsel %vm379, %v378, 0
        %v384 = vsel %vm379, %v376, 0
        %386 = vmatpush.xpose.msra.mxu0 0.0
        %387 = vmatpush.xpose.msra.mxu0 0.0
        %388 = vmatpush.xpose.msra.mxu0 0.0
        %389 = vmatpush.xpose.msra.mxu0 0.0
        %390 = vmatpush.xpose.msra.mxu0 0.0
        %391 = vmatpush.xpose.msra.mxu0 0.0
        %392 = vmatpush.xpose.msra.mxu0 0.0
        %393 = vmatpush.xpose.msra.mxu0 0.0
        %394 = vmatpush.xpose.msra.mxu0 0.0
        %395 = vmatpush.xpose.msra.mxu0 0.0
        %396 = vmatpush.xpose.msra.mxu0 0.0
        %397 = vmatpush.xpose.msra.mxu0 0.0
        %398 = vmatpush.xpose.msra.mxu0 0.0
        %399 = vmatpush.xpose.msra.mxu0 0.0
        %400 = vmatpush.xpose.msra.mxu0 0.0
        %401 = vmatpush.xpose.msra.mxu0 %v384
        %402 = vmatmul.f32.gmra.mxu0 %v381
        %v403 = vpop.f32.mrf.mxu0
        %v404 = vadd.f32 0.0, %v403
        %405 = vdwg.mxu0
        %v406 = vld [vmem:[#allocation3] sm:$0xff]
        %vm407 = vcmask 64512
        %v408 = vsel %vm407, %v404, -inf
        %409 = vmax.xlane.f32.xlu0 %v408
        %v410 = vpop.xlane.xlu0 %409
        %v411 = vmax.f32 %v406, %v410
        %v412 = vsub.f32 %v406, %v411
        %v413 = vmul.f32 %v412, 1.442695
        %v414 = vpow.pop %v413
        %416 = vset.pattern.permute.xlu0 0
        %417 = vperm.xlu0 %416, %v411
        %v418 = vpop.permute.xlu0 %417
        %v420 = vsub.f32 %v404, %v418
        %v421 = vmul.f32 %v420, 1.442695
        %v422 = vpow.pop %v421
        %v423 = vld [vmem:[#allocation4] sm:$0xff]
        %v424 = vmul.f32 %v414, %v423
        %v425 = vsel %vm407, %v422, 0.0
        %426 = vadd.xlane.f32.xlu0 %v425
        %v427 = vpop.xlane.xlu0 %426
        %v428 = vadd.f32 %v424, %v427
        %vm429 = vcmask 7168
        %430 = vst.msk [vmem:[#allocation4] sm:$0xff] %vm429, %v428
        %v431 = vld [vmem:[#allocation5] sm:$0xff]
        %433 = vset.pattern.permute.xlu0 0
        %434 = vperm.xlu0 %433, %v414
        %v435 = vpop.permute.xlu0 %434
        %v437 = vmul.f32 %v435, %v431
        %438 = vrot.lane.b32.xlu0 %v376, 112
        %v439 = vpop.permute.xlu0 %438
        %v442 = vsel %vm407, %v422, 0
        %444 = vmatpush.msra.mxu0 0.0
        %445 = vmatpush.msra.mxu0 0.0
        %446 = vmatpush.msra.mxu0 0.0
        %447 = vmatpush.msra.mxu0 0.0
        %448 = vmatpush.msra.mxu0 0.0
        %449 = vmatpush.msra.mxu0 0.0
        %450 = vmatpush.msra.mxu0 0.0
        %451 = vmatpush.msra.mxu0 0.0
        %452 = vmatpush.msra.mxu0 0.0
        %453 = vmatpush.msra.mxu0 0.0
        %454 = vmatpush.msra.mxu0 0.0
        %455 = vmatpush.msra.mxu0 0.0
        %456 = vmatpush.msra.mxu0 0.0
        %457 = vmatpush.msra.mxu0 0.0
        %458 = vmatpush.msra.mxu0 0.0
        %459 = vmatpush.msra.mxu0 %v439
        %460 = vmatmul.f32.gmra.mxu0 %v442
        %v461 = vpop.f32.mrf.mxu0
        %v462 = vadd.f32 0.0, %v461
        %463 = vdwg.mxu0
        %v464 = vadd.f32 %v437, %v462
        %465 = vst.msk [vmem:[#allocation5] sm:$0xff] %vm379, %v464
        %466 = vst.msk [vmem:[#allocation3] sm:$0xff] %vm429, %v411
        // Predicated region
        $region53: #{tpu_custom_call.1} parent=43 // pred_check
          %p467 = pneg %p301
        $region54: #{tpu_custom_call.1} parent=43 // pred_check_branch
          %469 = sbr.rel (%p467) target = $region56
        $region55: #{tpu_custom_call.1} parent=43 // pred_region
          %v470 = vld [vmem:[#allocation4] sm:$0xff]
          %v471 = vrcp.pop %v470
          %v472 = vld [vmem:[#allocation5] sm:$0xff]
          %474 = vset.pattern.permute.xlu0 0
          %475 = vperm.xlu0 %474, %v471
          %v476 = vpop.permute.xlu0 %475
          %v478 = vmul.f32 %v472, %v476
          %479 = vst.msk [vmem:[%s296] sm:$0xff] %vm379, %v478
        $region56: #{tpu_custom_call.1} parent=43 // pred_fallthru
          _
        %s480 = sand.u32 %s181, 1
        %s481 = scalar_lea.sflag [#allocation8], %s480
        %s482 = sand.u32 %s181, 1
        %s483 = smul.addr %s482, 8
        %s484 = scalar_lea.vmem [#allocation9], %s483
        // Predicated region
        $region57: #{tpu_custom_call.1} parent=43 // pred_check
          %p485 = pneg %p191
        $region58: #{tpu_custom_call.1} parent=43 // pred_check_branch
          %487 = sbr.rel (%p485) target = $region60
        $region59: #{tpu_custom_call.1} parent=43 // pred_region
          %489 = vsyncadd %s481, 0
          %s490 = smul.addr %s27, 8
          %s491 = scalar_lea.hbm %s6, %s490
          %s493 = sshll.u32 %s484, 4
          %s494 = int_to_ptr.vmem [resolvable:$true] %s493
          %s495 = sshll.u32 %s491, 4
          %s496 = int_to_ptr.hbm [resolvable:$true] %s495
          %498 = dma.vmem_to_hbm [thread:$0]  %s494, 128, %s496, %s481
        $region60: #{tpu_custom_call.1} parent=43 // pred_fallthru
          _
      $region44: #{tpu_custom_call.1} parent=5 // pred_fallthru
        _
      %p499 = scmp.le.s32.totalorder 2, %s18
      // Predicated region
      $region61: #{tpu_custom_call.1} parent=5 // pred_check
        %p500 = pneg %p499
      $region62: #{tpu_custom_call.1} parent=5 // pred_check_branch
        %502 = sbr.rel (%p500) target = $region64
      $region63: #{tpu_custom_call.1} parent=5 // pred_region
        %s503 = ssub.s32 %s18, 2
        // Predicated region
        $region65: #{tpu_custom_call.1} parent=63 // pred_check
          %p504 = pneg %p197
        $region66: #{tpu_custom_call.1} parent=63 // pred_check_branch
          %506 = sbr.rel (%p504) target = $region68
        $region67: #{tpu_custom_call.1} parent=63 // pred_region
          %s507 = sand.u32 %s182, 1
          %s508 = scalar_lea.sflag [#allocation8], %s507
          %s509 = sand.u32 %s182, 1
          %s510 = smul.addr %s509, 8
          %s511 = scalar_lea.vmem [#allocation9], %s510
          %513 = dma.done %s508, 128
        $region68: #{tpu_custom_call.1} parent=63 // pred_fallthru
          _
      $region64: #{tpu_custom_call.1} parent=5 // pred_fallthru
        _
    $region6: #{tpu_custom_call.1} parent=1 // loop_footer
      %s22 = sadd.s32 1, %s18
    $region7: #{tpu_custom_call.1} parent=1 // loop_footer_branch
      %17 = sbr.rel target = $region3
    $region8: #{tpu_custom_call.1} parent=1 // loop_exit
      _
    %514 = vsyncpa [#allocation7], 1
    %s515 = scalar_lea.sflag [#allocation7], 1
    %516 = vsyncpa %s515, 1
    %517 = vsyncpa [#allocation8], 1
    %s518 = scalar_lea.sflag [#allocation8], 1
    %519 = vsyncpa %s518, 1

</llo_original>
